<compile_context>
chip_gen: v7x
topology: tpu7x:2x2x1
jax: 0.10.0
libtpu: 0.0.40
codegen_flags: <defaults>
</compile_context>

<pallas_src>
import functools

import jax
import jax.numpy as jnp
from jax.experimental import pallas as pl
from jax.experimental.pallas import tpu as pltpu

# Newer jax exposes pltpu.CompilerParams; fall back to the older name if needed.
_CompilerParams = getattr(pltpu, "CompilerParams", None) or getattr(
    pltpu, "TPUCompilerParams")


def _margin_loss_kernel(x_ref, sv_ref, loss_ref, *, temperature: float,
                        margin: float, n: int):
    x = x_ref[...].astype(jnp.float32)        # (N, D)
    sv = sv_ref[...].astype(jnp.float32)      # (1, N); last lane is zero padding

    # L2 normalize along the last dim (F.normalize p=2, eps=1e-12).
    sumsq = jnp.sum(x * x, axis=-1, keepdims=True)            # (N, 1)
    inv_norm = jax.lax.rsqrt(jnp.maximum(sumsq, 1e-24))       # == 1 / max(||x||, 1e-12)
    xn = x * inv_norm

    # Similarity matrix: NT matmul (contract last dims), no transposed copy.
    sim = jax.lax.dot_general(
        xn, xn, dimension_numbers=(((1,), (1,)), ((), ())),
        preferred_element_type=jnp.float32)                   # (N, N)

    row = jax.lax.broadcasted_iota(jnp.int32, (n, n), 0)
    col = jax.lax.broadcasted_iota(jnp.int32, (n, n), 1)

    # Zero the main diagonal (diagonal cells feed the denominator columns).
    sim = jnp.where(row == col, 0.0, sim)

    col_valid = col < (n - 1)        # columns of `similarities[:, :-1]`
    pos_mask = row == col + 1        # sub-diagonal: sim[j+1, j] lives in column j

    # Hoisted per-column coefficients (1, N); broadcast down sublanes for free.
    a = 0.5 * (1.0 - sv)
    b = 0.5 * sv
    hinge = jnp.maximum(0.0, margin - sim)
    new_den = a * (sim * sim) + b * (hinge * hinge)
    exp_den = jnp.where(col_valid, jnp.exp(new_den), 0.0)
    col_sums = jnp.sum(exp_den, axis=0, keepdims=True)        # (1, N)

    # positives / T per column (one nonzero entry per valid column).  Only a
    # (1, N) exp is needed; log(exp_numerator) == positives / T.
    pos_over_t = jnp.sum(jnp.where(pos_mask, sim, 0.0), axis=0,
                         keepdims=True) / jnp.float32(temperature)   # (1, N)
    exp_num = jnp.exp(pos_over_t)                                    # (1, N)

    denom = col_sums - exp_num                                       # (1, N)
    valid = jax.lax.broadcasted_iota(jnp.int32, (1, n), 1) < (n - 1)
    safe_denom = jnp.where(valid, denom, 1.0)
    term = jnp.where(valid, pos_over_t - jnp.log(safe_denom), 0.0)

    loss_ref[0, 0] = -jnp.sum(term) / jnp.float32(n - 1)


def _margin_loss_batched_kernel(x_ref, sv_ref, loss_ref, *, temperature: float,
                                margin: float, n: int):
    x = x_ref[...].astype(jnp.float32)        # (tb, N, D)
    sv = sv_ref[...].astype(jnp.float32)      # (tb, 1, N); last lane is zero padding

    sumsq = jnp.sum(x * x, axis=-1, keepdims=True)            # (tb, N, 1)
    inv_norm = jax.lax.rsqrt(jnp.maximum(sumsq, 1e-24))
    xn = x * inv_norm

    # Batched NT matmul -> (tb, N, N), no transposed copies.
    sim = jnp.einsum("bnd,bmd->bnm", xn, xn,
                     preferred_element_type=jnp.float32)

    row = jax.lax.broadcasted_iota(jnp.int32, (1, n, n), 1)
    col = jax.lax.broadcasted_iota(jnp.int32, (1, n, n), 2)
    sim = jnp.where(row == col, 0.0, sim)

    col_valid = col < (n - 1)
    pos_mask = row == col + 1

    a = 0.5 * (1.0 - sv)                                      # (tb, 1, N)
    b = 0.5 * sv
    hinge = jnp.maximum(0.0, margin - sim)
    new_den = a * (sim * sim) + b * (hinge * hinge)
    exp_den = jnp.where(col_valid, jnp.exp(new_den), 0.0)
    col_sums = jnp.sum(exp_den, axis=1, keepdims=True)        # (tb, 1, N)

    pos_over_t = jnp.sum(jnp.where(pos_mask, sim, 0.0), axis=1,
                         keepdims=True) / jnp.float32(temperature)   # (tb, 1, N)
    exp_num = jnp.exp(pos_over_t)

    denom = col_sums - exp_num
    valid = jax.lax.broadcasted_iota(jnp.int32, (1, 1, n), 2) < (n - 1)
    safe_denom = jnp.where(valid, denom, 1.0)
    term = jnp.where(valid, pos_over_t - jnp.log(safe_denom), 0.0)   # (tb, 1, N)

    loss_ref[...] = -jnp.sum(term, axis=2) / jnp.float32(n - 1)      # (tb, 1)


def _sv_row(sim_vector, n: int) -> jax.Array:
    """sim_vector (scalar or (N-1,)) -> zero-padded (1, N) row."""
    sv = jnp.broadcast_to(jnp.asarray(sim_vector, jnp.float32).reshape(-1), (n - 1,))
    return jnp.pad(sv, (0, 1)).reshape(1, n)


def margin_loss(features: jax.Array, sim_vector: jax.Array,
                temperature: float = 0.5, margin: float = 5.0) -> jax.Array:
    """Pallas TPU implementation of MARGIN_LOSS.forward. Returns a scalar."""
    n, d = features.shape
    assert n >= 2, "MARGIN_LOSS needs at least 2 samples (loss divides by N-1)."

    sv_row = _sv_row(sim_vector, n)            # (1, N), last lane is dead padding
    kernel = functools.partial(_margin_loss_kernel,
                               temperature=float(temperature),
                               margin=float(margin), n=n)
    out = pl.pallas_call(
        kernel,
        out_shape=jax.ShapeDtypeStruct((1, 1), jnp.float32),
        in_specs=[pl.BlockSpec((n, d), lambda: (0, 0)),
                  pl.BlockSpec((1, n), lambda: (0, 0))],
        out_specs=pl.BlockSpec(memory_space=pltpu.SMEM),
    )(features, sv_row)
    return out[0, 0]


def margin_loss_batched(features: jax.Array, sim_vector: jax.Array,
                        temperature: float = 0.5, margin: float = 5.0,
                        *, batch_block: int = 8) -> jax.Array:
    """B independent MARGIN_LOSS instances in one pallas_call.

    features: (B, N, D); sim_vector: broadcastable to (B, N-1). Returns (B,).
    The batch is tiled in sub-blocks of `batch_block` (grid axis marked
    "parallel" so v7x's two TensorCores split it).
    """
    b, n, d = features.shape
    assert n >= 2, "MARGIN_LOSS needs at least 2 samples (loss divides by N-1)."
    tb = min(batch_block, b)
    assert b % tb == 0, "batch size must be divisible by the batch block"

    sv = jnp.broadcast_to(jnp.asarray(sim_vector, jnp.float32), (b, n - 1))
    sv_rows = jnp.pad(sv, ((0, 0), (0, 1)))[:, None, :]       # (B, 1, N)

    kernel = functools.partial(_margin_loss_batched_kernel,
                               temperature=float(temperature),
                               margin=float(margin), n=n)
    out = pl.pallas_call(
        kernel,
        out_shape=jax.ShapeDtypeStruct((b, 1), jnp.float32),
        grid=(b // tb,),
        in_specs=[pl.BlockSpec((tb, n, d), lambda i: (i, 0, 0)),
                  pl.BlockSpec((tb, 1, n), lambda i: (i, 0, 0))],
        out_specs=pl.BlockSpec((tb, 1), lambda i: (i, 0)),
        compiler_params=_CompilerParams(dimension_semantics=("parallel",)),
    )(features, sv_rows)
    return out[:, 0]


def _reference(features: jax.Array, sim_vector: jax.Array,
               temperature: float = 0.5, margin: float = 5.0) -> jax.Array:
    """Pure-JAX mirror of the PyTorch MARGIN_LOSS.forward."""
    x = features.astype(jnp.float32)
    xn = x / jnp.maximum(jnp.linalg.norm(x, axis=-1, keepdims=True), 1e-12)
    sim = xn @ xn.T
    sim = sim - jnp.diag(jnp.diag(sim))
    positives = jnp.diagonal(sim, offset=-1)                        # (N-1,)
    den = sim[:, :-1]                                               # (N, N-1)
    sv = jnp.asarray(sim_vector, jnp.float32)
    new_den = (1.0 - sv) * 0.5 * den ** 2 \
        + sv * 0.5 * jnp.maximum(0.0, margin - den) ** 2
    exp_num = jnp.exp(positives / temperature)
    exp_den = jnp.sum(jnp.exp(new_den), axis=0) - exp_num
    return -jnp.mean(jnp.log(exp_num / exp_den))


if __name__ == "__main__":
    key = jax.random.PRNGKey(0)
    k_feat, k_sv, k_bfeat, k_bsv = jax.random.split(key, 4)

    # Single loss: (num_samples, hidden) contrastive features.
    N, D = 8, 32
    features = jax.random.normal(k_feat, (N, D), dtype=jnp.float32)
    sim_vector = jax.random.bernoulli(k_sv, 0.5, (N - 1,)).astype(jnp.float32)

    loss = jax.block_until_ready(margin_loss(features, sim_vector, 0.5, 5.0))
    ref = jax.block_until_ready(_reference(features, sim_vector, 0.5, 5.0))
    assert jnp.allclose(loss, ref, rtol=1e-5, atol=1e-5), (loss, ref)

    # Batched: 16 independent losses in a single pallas_call (grid=(2,), parallel).
    B = 16
    bfeat = jax.random.normal(k_bfeat, (B, N, D), dtype=jnp.float32)
    bsv = jax.random.bernoulli(k_bsv, 0.5, (B, N - 1)).astype(jnp.float32)

    blosses = jax.block_until_ready(margin_loss_batched(bfeat, bsv, 0.5, 5.0))
    brefs = jnp.stack([_reference(bfeat[i], bsv[i], 0.5, 5.0) for i in range(B)])
    brefs = jax.block_until_ready(brefs)
    assert jnp.allclose(blosses, brefs, rtol=1e-4, atol=1e-4), (blosses, brefs)

    print("KERNEL_OK")
</pallas_src>

<mosaic_0001>
module attributes {stable_mosaic.version = 11 : i64} {
  func.func @_margin_loss_kernel(%arg0: memref<8x32xf32, #tpu.memory_space<vmem>>, %arg1: memref<1x8xf32, #tpu.memory_space<vmem>>, %arg2: memref<1x1xf32, #tpu.memory_space<smem>>) attributes {dimension_semantics = [], scalar_prefetch = 0 : i64, scratch_operands = 0 : i64, tpu.core_type = #tpu.core_type<tc>} {
    %c0 = arith.constant 0 : index
    %c0_0 = arith.constant 0 : index
    %0 = vector.load %arg0[%c0, %c0_0] : memref<8x32xf32, #tpu.memory_space<vmem>>, vector<8x32xf32>
    %c0_1 = arith.constant 0 : index
    %c0_2 = arith.constant 0 : index
    %1 = vector.load %arg1[%c0_1, %c0_2] : memref<1x8xf32, #tpu.memory_space<vmem>>, vector<1x8xf32>
    %2 = arith.mulf %0, %0 : vector<8x32xf32>
    %cst = arith.constant dense<0.000000e+00> : vector<8xf32>
    %3 = vector.multi_reduction <add>, %2, %cst [1] : vector<8x32xf32> to vector<8xf32>
    %4 = vector.shape_cast %3 : vector<8xf32> to vector<8x1xf32>
    %cst_3 = arith.constant 1.000000e-24 : f32
    %5 = vector.broadcast %cst_3 : f32 to vector<8x1xf32>
    %6 = arith.maximumf %4, %5 : vector<8x1xf32>
    %7 = math.rsqrt %6 : vector<8x1xf32>
    %8 = vector.broadcast %7 : vector<8x1xf32> to vector<8x32xf32>
    %9 = arith.mulf %0, %8 : vector<8x32xf32>
    %cst_4 = arith.constant dense<0.000000e+00> : vector<8x8xf32>
    %10 = tpu.matmul %9, %9, %cst_4 {dimension_numbers = #tpu.dot_dimension_numbers<[1], [1], [0], [0], [0, 0, 1, 0], [], []>} : vector<8x32xf32>, vector<8x32xf32>, vector<8x8xf32> -> vector<8x8xf32>
    %11 = tpu.iota {dimensions = array<i32: 0>} : vector<8x8xi32>
    %12 = tpu.iota {dimensions = array<i32: 1>} : vector<8x8xi32>
    %13 = arith.cmpi eq, %11, %12 : vector<8x8xi32>
    %cst_5 = arith.constant 0.000000e+00 : f32
    %14 = vector.broadcast %cst_5 : f32 to vector<8x8xf32>
    %15 = arith.select %13, %14, %10 : vector<8x8xi1>, vector<8x8xf32>
    %c7_i32 = arith.constant 7 : i32
    %16 = vector.broadcast %c7_i32 : i32 to vector<8x8xi32>
    %17 = arith.cmpi slt, %12, %16 : vector<8x8xi32>
    %c1_i32 = arith.constant 1 : i32
    %18 = vector.broadcast %c1_i32 : i32 to vector<8x8xi32>
    %19 = arith.addi %12, %18 : vector<8x8xi32>
    %20 = arith.cmpi eq, %11, %19 : vector<8x8xi32>
    %cst_6 = arith.constant 1.000000e+00 : f32
    %21 = vector.broadcast %cst_6 : f32 to vector<1x8xf32>
    %22 = arith.subf %21, %1 : vector<1x8xf32>
    %cst_7 = arith.constant 5.000000e-01 : f32
    %23 = vector.broadcast %cst_7 : f32 to vector<1x8xf32>
    %24 = arith.mulf %23, %22 : vector<1x8xf32>
    %cst_8 = arith.constant 5.000000e-01 : f32
    %25 = vector.broadcast %cst_8 : f32 to vector<1x8xf32>
    %26 = arith.mulf %25, %1 : vector<1x8xf32>
    %cst_9 = arith.constant 5.000000e+00 : f32
    %27 = vector.broadcast %cst_9 : f32 to vector<8x8xf32>
    %28 = arith.subf %27, %15 : vector<8x8xf32>
    %cst_10 = arith.constant 0.000000e+00 : f32
    %29 = vector.broadcast %cst_10 : f32 to vector<8x8xf32>
    %30 = arith.maximumf %29, %28 : vector<8x8xf32>
    %31 = arith.mulf %15, %15 : vector<8x8xf32>
    %32 = vector.broadcast %24 : vector<1x8xf32> to vector<8x8xf32>
    %33 = arith.mulf %32, %31 : vector<8x8xf32>
    %34 = arith.mulf %30, %30 : vector<8x8xf32>
    %35 = vector.broadcast %26 : vector<1x8xf32> to vector<8x8xf32>
    %36 = arith.mulf %35, %34 : vector<8x8xf32>
    %37 = arith.addf %33, %36 : vector<8x8xf32>
    %38 = math.exp %37 : vector<8x8xf32>
    %cst_11 = arith.constant 0.000000e+00 : f32
    %39 = vector.broadcast %cst_11 : f32 to vector<8x8xf32>
    %40 = arith.select %17, %38, %39 : vector<8x8xi1>, vector<8x8xf32>
    %cst_12 = arith.constant dense<0.000000e+00> : vector<8xf32>
    %41 = vector.multi_reduction <add>, %40, %cst_12 [0] : vector<8x8xf32> to vector<8xf32>
    %42 = vector.shape_cast %41 : vector<8xf32> to vector<1x8xf32>
    %cst_13 = arith.constant 0.000000e+00 : f32
    %43 = vector.broadcast %cst_13 : f32 to vector<8x8xf32>
    %44 = arith.select %20, %15, %43 : vector<8x8xi1>, vector<8x8xf32>
    %cst_14 = arith.constant dense<0.000000e+00> : vector<8xf32>
    %45 = vector.multi_reduction <add>, %44, %cst_14 [0] : vector<8x8xf32> to vector<8xf32>
    %46 = vector.shape_cast %45 : vector<8xf32> to vector<1x8xf32>
    %cst_15 = arith.constant 5.000000e-01 : f32
    %47 = vector.broadcast %cst_15 : f32 to vector<1x8xf32>
    %48 = arith.divf %46, %47 : vector<1x8xf32>
    %49 = math.exp %48 : vector<1x8xf32>
    %50 = arith.subf %42, %49 : vector<1x8xf32>
    %51 = tpu.iota {dimensions = array<i32: 1>} : vector<1x8xi32>
    %c7_i32_16 = arith.constant 7 : i32
    %52 = vector.broadcast %c7_i32_16 : i32 to vector<1x8xi32>
    %53 = arith.cmpi slt, %51, %52 : vector<1x8xi32>
    %cst_17 = arith.constant 1.000000e+00 : f32
    %54 = vector.broadcast %cst_17 : f32 to vector<1x8xf32>
    %55 = arith.select %53, %50, %54 : vector<1x8xi1>, vector<1x8xf32>
    %56 = math.log %55 : vector<1x8xf32>
    %57 = arith.subf %48, %56 : vector<1x8xf32>
    %cst_18 = arith.constant 0.000000e+00 : f32
    %58 = vector.broadcast %cst_18 : f32 to vector<1x8xf32>
    %59 = arith.select %53, %57, %58 : vector<1x8xi1>, vector<1x8xf32>
    %60 = vector.shape_cast %59 : vector<1x8xf32> to vector<1x1x8xf32>
    %cst_19 = arith.constant dense<0.000000e+00> : vector<1xf32>
    %61 = vector.multi_reduction <add>, %60, %cst_19 [1, 2] : vector<1x1x8xf32> to vector<1xf32>
    %62 = vector.shape_cast %61 : vector<1xf32> to vector<1x1x1xf32>
    %63 = vector.extract %62[0, 0, 0] : f32 from vector<1x1x1xf32>
    %cst_20 = arith.constant 0.000000e+00 : f32
    %64 = arith.subf %cst_20, %63 : f32
    %cst_21 = arith.constant 7.000000e+00 : f32
    %65 = arith.divf %64, %cst_21 : f32
    %c0_22 = arith.constant 0 : index
    %c0_23 = arith.constant 0 : index
    %66 = memref.load %arg2[%c0_22, %c0_23] : memref<1x1xf32, #tpu.memory_space<smem>>
    memref.store %65, %arg2[%c0_22, %c0_23] : memref<1x1xf32, #tpu.memory_space<smem>>
    return
  }
}

</mosaic_0001>

<llo_original>
// kernel: tpu_custom_call.1
$region0: #{tpu_custom_call.1}
  #allocation0 [shape = 'u32[]', space=smem, size = 0x4, offset = 0x4, fixed_abs, tag = 'smem constant byte address 0x4 - core index']
  #allocation1 [shape = 'u32[144,128]{1,0:T(1,128)}', space=vmem, size = 0x12000, scoped, tag = 'internal scratch']
  %s0 = inlined_call_operand.hbm [shape: f32[8,32], index: 0, kind: input, shape index: {}]
  %s1 = inlined_call_operand.vmem [shape: f32[1,8], index: 1, kind: input, shape index: {}]
  %s2 = inlined_call_operand.hbm [shape: f32[1,1], index: 2, kind: output, shape index: {}]
  %s3 = sld [smem:[#allocation0]]
  $region22: #{tpu_custom_call.1} parent=0
    _
  %s5 = ssub.s32 1, %s3
  %s6 = scalar_select 0, %s5, %s3
  $region1: #{tpu_custom_call.1} parent=0
    #allocation2 [shape = 'u8[4096]{0}', space=vmem, size = 0x1000, scoped, tag = 'input window, operand 0, single buffered']
    #allocation3 [shape = 's32[1]{0}', space=sflag, size = 0x4, scoped, tag = 'scoped memory for tpu_custom_call.1']
    #allocation4 [shape = 's32[1]{0}', space=sflag, size = 0x4, scoped, tag = 'scoped memory for tpu_custom_call.1']
    #allocation5 [shape = 'u8[512]{0}', space=smem, size = 0x200, scoped, tag = 'output window, operand 0, single buffered']
    %7 = vsyncpa [#allocation3], 0
    %8 = vsyncpa [#allocation4], 0
    // Predicated region
    $region2: #{tpu_custom_call.1} parent=1 // pred_check
      _
    $region3: #{tpu_custom_call.1} parent=1 // pred_check_branch
      %10 = sbr.rel (0) target = $region5
    $region4: #{tpu_custom_call.1} parent=1 // pred_region
      %s12 = ssub.s32 128, 128
      %13 = vsyncadd [#allocation3], %s12
      %s15 = sshll.u32 [#allocation2], 4
      %s16 = int_to_ptr.vmem [resolvable:$true] %s15
      %18 = dma.hbm_to_vmem [thread:$0]  %s0, 128, %s16, [#allocation3]
    $region5: #{tpu_custom_call.1} parent=1 // pred_fallthru
      _
    // Predicated region
    $region6: #{tpu_custom_call.1} parent=1 // pred_check
      _
    $region7: #{tpu_custom_call.1} parent=1 // pred_check_branch
      %20 = sbr.rel (0) target = $region9
    $region8: #{tpu_custom_call.1} parent=1 // pred_region
      _
    $region9: #{tpu_custom_call.1} parent=1 // pred_fallthru
      _
    // Predicated region
    $region10: #{tpu_custom_call.1} parent=1 // pred_check
      _
    $region11: #{tpu_custom_call.1} parent=1 // pred_check_branch
      %22 = sbr.rel (0) target = $region13
    $region12: #{tpu_custom_call.1} parent=1 // pred_region
      %23 = dma.done [#allocation3], 128
    $region13: #{tpu_custom_call.1} parent=1 // pred_fallthru
      _
    %v24 = vld [vmem:[#allocation2] sm:$0xff]
    %v25 = vld [vmem:[%s1] sm:$0x1]
    %v26 = vmul.f32 %v24, %v24
    %vm27 = vcmask 261120
    %v28 = vsel %vm27, %v26, 0.0
    %29 = vadd.xlane.f32.xlu0 %v28
    %v30 = vpop.xlane.xlu0 %29
    %v31 = vmax.f32 %v30, 1e-24
    %v32 = vrsqrt.pop %v31
    %v33 = vmul.f32 %v24, %v32
    %v35 = vsel %vm27, %v33, 0
    %37 = vmatprep.subr.mxu0 0.0
    %38 = vmatpush1.xpose.msra.mxu0 %v35
    %39 = vmatprep.subr.mxu0 0.0
    %40 = vmatpush1.xpose.msra.mxu0 0.0
    %41 = vmatprep.subr.mxu0 0.0
    %42 = vmatpush1.xpose.msra.mxu0 0.0
    %43 = vmatprep.subr.mxu0 0.0
    %44 = vmatpush1.xpose.msra.mxu0 0.0
    %45 = vmatprep.subr.mxu0 0.0
    %46 = vmatpush1.xpose.msra.mxu0 0.0
    %47 = vmatprep.subr.mxu0 0.0
    %48 = vmatpush1.xpose.msra.mxu0 0.0
    %49 = vmatprep.subr.mxu0 0.0
    %50 = vmatpush1.xpose.msra.mxu0 0.0
    %51 = vmatprep.subr.mxu0 0.0
    %52 = vmatpush1.xpose.msra.mxu0 0.0
    %53 = vmatprep.subr.mxu0 0.0
    %54 = vmatpush1.xpose.msra.mxu0 0.0
    %55 = vmatprep.subr.mxu0 0.0
    %56 = vmatpush1.xpose.msra.mxu0 0.0
    %57 = vmatprep.subr.mxu0 0.0
    %58 = vmatpush1.xpose.msra.mxu0 0.0
    %59 = vmatprep.subr.mxu0 0.0
    %60 = vmatpush1.xpose.msra.mxu0 0.0
    %61 = vmatprep.subr.mxu0 0.0
    %62 = vmatpush1.xpose.msra.mxu0 0.0
    %63 = vmatprep.subr.mxu0 0.0
    %64 = vmatpush1.xpose.msra.mxu0 0.0
    %65 = vmatprep.subr.mxu0 0.0
    %66 = vmatpush1.xpose.msra.mxu0 0.0
    %67 = vmatprep.subr.mxu0 0.0
    %68 = vmatpush1.xpose.msra.mxu0 0.0
    %69 = vmatprep.subr.mxu0 0.0
    %70 = vmatpush1.xpose.msra.mxu0 0.0
    %71 = vmatprep.subr.mxu0 0.0
    %72 = vmatpush1.xpose.msra.mxu0 0.0
    %73 = vmatprep.subr.mxu0 0.0
    %74 = vmatpush1.xpose.msra.mxu0 0.0
    %75 = vmatprep.subr.mxu0 0.0
    %76 = vmatpush1.xpose.msra.mxu0 0.0
    %77 = vmatprep.subr.mxu0 0.0
    %78 = vmatpush1.xpose.msra.mxu0 0.0
    %79 = vmatprep.subr.mxu0 0.0
    %80 = vmatpush1.xpose.msra.mxu0 0.0
    %81 = vmatprep.subr.mxu0 0.0
    %82 = vmatpush1.xpose.msra.mxu0 0.0
    %83 = vmatprep.subr.mxu0 0.0
    %84 = vmatpush1.xpose.msra.mxu0 0.0
    %85 = vmatprep.subr.mxu0 0.0
    %86 = vmatpush1.xpose.msra.mxu0 0.0
    %87 = vmatprep.subr.mxu0 0.0
    %88 = vmatpush1.xpose.msra.mxu0 0.0
    %89 = vmatprep.subr.mxu0 0.0
    %90 = vmatpush1.xpose.msra.mxu0 0.0
    %91 = vmatprep.subr.mxu0 0.0
    %92 = vmatpush1.xpose.msra.mxu0 0.0
    %93 = vmatprep.subr.mxu0 0.0
    %94 = vmatpush1.xpose.msra.mxu0 0.0
    %95 = vmatprep.subr.mxu0 0.0
    %96 = vmatpush1.xpose.msra.mxu0 0.0
    %97 = vmatprep.subr.mxu0 0.0
    %98 = vmatpush1.xpose.msra.mxu0 0.0
    %99 = vmatprep.subr.mxu0 0.0
    %100 = vmatpush1.xpose.msra.mxu0 0.0
    %101 = vmatprep.mubr.f32.mxu0 0.0
    %102 = vmatmul.mubr.f32.gmra.mrb[0].mxu0 %v35
    %v103 = vpop.f32.mrb[0].mxu0
    %v104 = vadd.f32 0.0, %v103
    %v105 = vpop.f32.mrb[0].mxu0
    %106 = vdwg.mxu0
    %v107 = vlaneseq
    %v108 = vshrl.u32 %v107, 7
    %v109 = vlaneseq
    %v110 = vand.u32 %v109, 127
    %vm111 = vcmp.eq.s32.totalorder %v108, %v110
    %v112 = vsel %vm111, 0.0, %v104
    %vm113 = vcmp.lt.s32.totalorder %v110, 7
    %v114 = vadd.s32 %v110, 1
    %vm115 = vcmp.eq.s32.totalorder %v108, %v114
    %v116 = vsub.f32 1.0, %v25
    %v117 = vmul.f32 %v116, 0.5
    %v118 = vmul.f32 %v25, 0.5
    %v119 = vsub.f32 5.0, %v112
    %v120 = vmax.f32 %v119, 0.0
    %v121 = vmul.f32 %v112, %v112
    %v123 = vlaneseq
    %v124 = vshrl.u32 %v123, 7
    %v125 = vsub.s32 0, %v124
    %v126 = vrot.slane %v117, %v125
    %v128 = vmul.f32 %v126, %v121
    %v129 = vmul.f32 %v120, %v120
    %v131 = vlaneseq
    %v132 = vshrl.u32 %v131, 7
    %v133 = vsub.s32 0, %v132
    %v134 = vrot.slane %v118, %v133
    %v136 = vmul.f32 %v134, %v129
    %v137 = vadd.f32 %v128, %v136
    %v138 = vmul.f32 %v137, 1.442695
    %v139 = vpow.pop %v138
    %v140 = vsel %vm113, %v139, 0.0
    %vm141 = vcmask 64512
    %v142 = vsel %vm141, %v140, 0.0
    %v143 = vrot.slane %v142, 4
    %v144 = vadd.f32 %v142, %v143
    %v145 = vrot.slane %v144, 2
    %v146 = vadd.f32 %v144, %v145
    %v147 = vrot.slane %v146, 1
    %v148 = vadd.f32 %v146, %v147
    %v149 = vsel %vm115, %v112, 0.0
    %v150 = vsel %vm141, %v149, 0.0
    %v151 = vrot.slane %v150, 4
    %v152 = vadd.f32 %v150, %v151
    %v153 = vrot.slane %v152, 2
    %v154 = vadd.f32 %v152, %v153
    %v155 = vrot.slane %v154, 1
    %v156 = vadd.f32 %v154, %v155
    %v157 = vrcp.pop 0.5
    %v158 = vmul.f32 %v156, %v157
    %v159 = vmul.f32 %v158, 1.442695
    %v160 = vpow.pop %v159
    %v161 = vsub.f32 %v148, %v160
    %v162 = vsel %vm113, %v161, 1.0
    %v163 = vlog2.pop %v162
    %v164 = vmul.f32 %v163, 0.6931472
    %v165 = vsub.f32 %v158, %v164
    %v166 = vsel %vm113, %v165, 0.0
    %vm167 = vcmask 57344
    %v168 = vsel %vm167, %v166, 0.0
    %169 = vadd.xlane.f32.xlu0 %v168
    %v170 = vpop.xlane.xlu0 %169
    %v171 = vrot.slane %v170, 4
    %v172 = vadd.f32 %v170, %v171
    %v173 = vrot.slane %v172, 2
    %v174 = vadd.f32 %v172, %v173
    %v175 = vrot.slane %v174, 1
    %v176 = vadd.f32 %v174, %v175
    %s177 = vtos %v176
    %s178 = ssub.f32 0.0, %s177
    %v179 = vrcp.pop 7.0
    %s180 = vtos %v179
    %s181 = smul.f32 %s178, %s180
    %s182 = scalar_lea.smem [#allocation5], 0
    %183 = sst [smem:[%s182]] %s181
    // Predicated region
    $region14: #{tpu_custom_call.1} parent=1 // pred_check
      _
    $region15: #{tpu_custom_call.1} parent=1 // pred_check_branch
      %185 = sbr.rel (0) target = $region17
    $region16: #{tpu_custom_call.1} parent=1 // pred_region
      %s187 = ssub.s32 16, 16
      %188 = vsyncadd [#allocation4], %s187
      %191 = dma.smem_to_hbm [#allocation5], 16, %s2, [#allocation4]
    $region17: #{tpu_custom_call.1} parent=1 // pred_fallthru
      _
    // Predicated region
    $region18: #{tpu_custom_call.1} parent=1 // pred_check
      _
    $region19: #{tpu_custom_call.1} parent=1 // pred_check_branch
      %193 = sbr.rel (0) target = $region21
    $region20: #{tpu_custom_call.1} parent=1 // pred_region
      %194 = dma.done [#allocation4], 16
    $region21: #{tpu_custom_call.1} parent=1 // pred_fallthru
      _
    %195 = sfence
    %196 = vsyncpa [#allocation3], 1
    %197 = vsyncpa [#allocation4], 1

</llo_original>
